<compile_context>
chip_gen: v6e
topology: v6e:2x2x1
jax: 0.10.0
libtpu: 0.0.40
codegen_flags: <defaults>
</compile_context>

<pallas_src>
import jax
import jax.numpy as jnp
from jax.experimental import pallas as pl
from jax.experimental.pallas import tpu as pltpu

# --- static problem sizes (small, consistent with the module) ---------------
INPUT_SIZE = 32          # Discriminator(input_size=32)
H1 = 256
H2 = 256
BATCH = 256              # batch lives in the lane dimension (2 x 128 lanes)


# ----------------------------- Pallas kernel --------------------------------
def _disc_kernel(x_ref, w1_ref, b1_ref, w2_ref, b2_ref, w3_ref, b3_ref, o_ref):
    # Feature-major layout: activations are (features, batch); batch fills lanes.
    # Layer 1: Linear + LeakyReLU(0.2)   (bf16 matmul, f32 accumulate/elementwise)
    h = jnp.dot(w1_ref[...], x_ref[...],
                preferred_element_type=jnp.float32) + b1_ref[...]
    h = jnp.maximum(h, 0.2 * h)                       # LeakyReLU(0.2), pure VPU
    # Layer 2: Linear + LeakyReLU(0.2)
    h = jnp.dot(w2_ref[...], h.astype(jnp.bfloat16),
                preferred_element_type=jnp.float32) + b2_ref[...]
    h = jnp.maximum(h, 0.2 * h)
    # Layer 3: Linear(256 -> 1) as a (1,256)@(256,B) matmul -> lane-dense (1, B)
    o = jnp.dot(w3_ref[...], h.astype(jnp.bfloat16),
                preferred_element_type=jnp.float32) + b3_ref[...]
    o_ref[...] = jax.nn.sigmoid(o)                    # one real output row


def discriminator_forward(x, params, *, tile_b=None):
    batch = x.shape[0]
    if tile_b is None:
        tile_b = batch            # single grid step: launch/DMA bound at this size
    assert batch % tile_b == 0
    assert tile_b == batch or tile_b % 128 == 0
    grid = (batch // tile_b,)

    # Batch-in-lanes layout; bf16 cast in the wrapper halves the x DMA.
    x_t = x.T.astype(jnp.bfloat16)                    # (INPUT_SIZE, B)

    out_t = pl.pallas_call(
        _disc_kernel,
        out_shape=jax.ShapeDtypeStruct((1, batch), jnp.float32),
        grid_spec=pltpu.PrefetchScalarGridSpec(
            num_scalar_prefetch=0,
            grid=grid,
            in_specs=[
                # activations: one lane-tile of the batch per grid step
                pl.BlockSpec((INPUT_SIZE, tile_b), lambda i: (0, i)),
                # weights/biases: constant block index -> DMAed once, stay resident
                pl.BlockSpec((H1, INPUT_SIZE), lambda i: (0, 0)),
                pl.BlockSpec((H1, 1), lambda i: (0, 0)),
                pl.BlockSpec((H2, H1), lambda i: (0, 0)),
                pl.BlockSpec((H2, 1), lambda i: (0, 0)),
                pl.BlockSpec((1, H2), lambda i: (0, 0)),
                pl.BlockSpec((1, 1), lambda i: (0, 0)),
            ],
            out_specs=pl.BlockSpec((1, tile_b), lambda i: (0, i)),
        ),
        compiler_params=pltpu.CompilerParams(
            dimension_semantics=("parallel",),
        ),
    )(x_t, params["w1"], params["b1c"],
      params["w2"], params["b2c"],
      params["w3"], params["b3c"])
    # (1, B) row-major == (B, 1) row-major: reshape is free.
    return out_t.reshape(batch, 1)


# ------------------------------- glue (JAX) ---------------------------------
def init_params(key):
    """PyTorch nn.Linear default init: U(-1/sqrt(fan_in), 1/sqrt(fan_in))."""
    ks = jax.random.split(key, 3)

    def lin(k, fan_in, fan_out):
        bound = 1.0 / jnp.sqrt(jnp.float32(fan_in))
        kw, kb = jax.random.split(k)
        w = jax.random.uniform(kw, (fan_out, fan_in), jnp.float32, -bound, bound)
        b = jax.random.uniform(kb, (fan_out,), jnp.float32, -bound, bound)
        return w, b

    w1, b1 = lin(ks[0], INPUT_SIZE, H1)
    w2, b2 = lin(ks[1], H1, H2)
    w3, b3 = lin(ks[2], H2, 1)

    raw = {"w1": w1, "b1": b1, "w2": w2, "b2": b2, "w3": w3, "b3": b3}
    # Feature-major kernel uses PyTorch (out, in) weights as-is; biases become
    # column vectors so they broadcast along the lane (batch) dimension.
    packed = {
        "w1": w1.astype(jnp.bfloat16), "b1c": b1.reshape(H1, 1),
        "w2": w2.astype(jnp.bfloat16), "b2c": b2.reshape(H2, 1),
        "w3": w3.astype(jnp.bfloat16), "b3c": b3.reshape(1, 1),
    }
    return raw, packed


def reference_forward(x, raw):
    """Pure-JAX f32 reference matching the PyTorch module."""
    h = x @ raw["w1"].T + raw["b1"]
    h = jnp.where(h > 0, h, 0.2 * h)
    h = h @ raw["w2"].T + raw["b2"]
    h = jnp.where(h > 0, h, 0.2 * h)
    h = h @ raw["w3"].T + raw["b3"]
    return jax.nn.sigmoid(h)


if __name__ == "__main__":
    key = jax.random.PRNGKey(0)
    pkey, xkey = jax.random.split(key)
    raw, params = init_params(pkey)
    x = jax.random.normal(xkey, (BATCH, INPUT_SIZE), dtype=jnp.float32)

    fwd = jax.jit(lambda x, p: discriminator_forward(x, p))
    out = fwd(x, params)
    jax.block_until_ready(out)

    assert out.shape == (BATCH, 1)
    assert bool(jnp.all(jnp.isfinite(out)))
    assert bool(jnp.all((out > 0.0) & (out < 1.0)))

    ref = reference_forward(x, raw)
    # bf16 x + bf16 weights -> sub-1% logit error; sigmoid bounds it further.
    assert bool(jnp.allclose(out, ref, atol=5e-2)), \
        f"max abs err {float(jnp.max(jnp.abs(out - ref)))}"

    print("KERNEL_OK")
</pallas_src>

<mosaic_0001>
module attributes {stable_mosaic.version = 11 : i64} {
  func.func @_disc_kernel(%arg0: i32, %arg1: memref<32x256xbf16, #tpu.memory_space<vmem>>, %arg2: memref<256x32xbf16, #tpu.memory_space<vmem>>, %arg3: memref<256x1xf32, #tpu.memory_space<vmem>>, %arg4: memref<256x256xbf16, #tpu.memory_space<vmem>>, %arg5: memref<256x1xf32, #tpu.memory_space<vmem>>, %arg6: memref<1x256xbf16, #tpu.memory_space<vmem>>, %arg7: memref<1x1xf32, #tpu.memory_space<vmem>>, %arg8: memref<1x256xf32, #tpu.memory_space<vmem>>) attributes {dimension_semantics = [#tpu.dimension_semantics<parallel>], iteration_bounds = array<i64: 1>, scalar_prefetch = 0 : i64, scratch_operands = 0 : i64, tpu.core_type = #tpu.core_type<tc>, window_params = [{transform_indices = @transform_0, window_bounds = array<i64: 32, 256>}, {pipeline_mode = #tpu.pipeline_mode<synchronous>, transform_indices = @transform_1, window_bounds = array<i64: 256, 32>}, {pipeline_mode = #tpu.pipeline_mode<synchronous>, transform_indices = @transform_2, window_bounds = array<i64: 256, 1>}, {pipeline_mode = #tpu.pipeline_mode<synchronous>, transform_indices = @transform_3, window_bounds = array<i64: 256, 256>}, {pipeline_mode = #tpu.pipeline_mode<synchronous>, transform_indices = @transform_4, window_bounds = array<i64: 256, 1>}, {pipeline_mode = #tpu.pipeline_mode<synchronous>, transform_indices = @transform_5, window_bounds = array<i64: 1, 256>}, {pipeline_mode = #tpu.pipeline_mode<synchronous>, transform_indices = @transform_6, window_bounds = array<i64: 1, 1>}, {transform_indices = @transform_7, window_bounds = array<i64: 1, 256>}]} {
    %c0 = arith.constant 0 : index
    %c0_0 = arith.constant 0 : index
    %0 = vector.load %arg2[%c0, %c0_0] : memref<256x32xbf16, #tpu.memory_space<vmem>>, vector<256x32xbf16>
    %c0_1 = arith.constant 0 : index
    %c0_2 = arith.constant 0 : index
    %1 = vector.load %arg1[%c0_1, %c0_2] : memref<32x256xbf16, #tpu.memory_space<vmem>>, vector<32x256xbf16>
    %cst = arith.constant dense<0.000000e+00> : vector<256x256xf32>
    %2 = tpu.matmul %0, %1, %cst {dimension_numbers = #tpu.dot_dimension_numbers<[1], [0], [0], [1], [0, 0, 1, 1], [], []>} : vector<256x32xbf16>, vector<32x256xbf16>, vector<256x256xf32> -> vector<256x256xf32>
    %c0_3 = arith.constant 0 : index
    %c0_4 = arith.constant 0 : index
    %3 = vector.load %arg3[%c0_3, %c0_4] : memref<256x1xf32, #tpu.memory_space<vmem>>, vector<256x1xf32>
    %4 = vector.broadcast %3 : vector<256x1xf32> to vector<256x256xf32>
    %5 = arith.addf %2, %4 : vector<256x256xf32>
    %cst_5 = arith.constant 2.000000e-01 : f32
    %6 = vector.broadcast %cst_5 : f32 to vector<256x256xf32>
    %7 = arith.mulf %6, %5 : vector<256x256xf32>
    %8 = arith.maximumf %5, %7 : vector<256x256xf32>
    %c0_6 = arith.constant 0 : index
    %c0_7 = arith.constant 0 : index
    %9 = vector.load %arg4[%c0_6, %c0_7] : memref<256x256xbf16, #tpu.memory_space<vmem>>, vector<256x256xbf16>
    %10 = arith.truncf %8 : vector<256x256xf32> to vector<256x256xbf16>
    %cst_8 = arith.constant dense<0.000000e+00> : vector<256x256xf32>
    %11 = tpu.matmul %9, %10, %cst_8 {dimension_numbers = #tpu.dot_dimension_numbers<[1], [0], [0], [1], [0, 0, 1, 1], [], []>} : vector<256x256xbf16>, vector<256x256xbf16>, vector<256x256xf32> -> vector<256x256xf32>
    %c0_9 = arith.constant 0 : index
    %c0_10 = arith.constant 0 : index
    %12 = vector.load %arg5[%c0_9, %c0_10] : memref<256x1xf32, #tpu.memory_space<vmem>>, vector<256x1xf32>
    %13 = vector.broadcast %12 : vector<256x1xf32> to vector<256x256xf32>
    %14 = arith.addf %11, %13 : vector<256x256xf32>
    %cst_11 = arith.constant 2.000000e-01 : f32
    %15 = vector.broadcast %cst_11 : f32 to vector<256x256xf32>
    %16 = arith.mulf %15, %14 : vector<256x256xf32>
    %17 = arith.maximumf %14, %16 : vector<256x256xf32>
    %c0_12 = arith.constant 0 : index
    %c0_13 = arith.constant 0 : index
    %18 = vector.load %arg6[%c0_12, %c0_13] : memref<1x256xbf16, #tpu.memory_space<vmem>>, vector<1x256xbf16>
    %19 = arith.truncf %17 : vector<256x256xf32> to vector<256x256xbf16>
    %cst_14 = arith.constant dense<0.000000e+00> : vector<1x256xf32>
    %20 = tpu.matmul %18, %19, %cst_14 {dimension_numbers = #tpu.dot_dimension_numbers<[1], [0], [0], [1], [0, 0, 1, 1], [], []>} : vector<1x256xbf16>, vector<256x256xbf16>, vector<1x256xf32> -> vector<1x256xf32>
    %c0_15 = arith.constant 0 : index
    %c0_16 = arith.constant 0 : index
    %21 = vector.load %arg7[%c0_15, %c0_16] : memref<1x1xf32, #tpu.memory_space<vmem>>, vector<1x1xf32>
    %22 = vector.broadcast %21 : vector<1x1xf32> to vector<1x256xf32>
    %23 = arith.addf %20, %22 : vector<1x256xf32>
    %24 = arith.negf %23 : vector<1x256xf32>
    %25 = math.exp %24 : vector<1x256xf32>
    %cst_17 = arith.constant 1.000000e+00 : f32
    %26 = vector.broadcast %cst_17 : f32 to vector<1x256xf32>
    %27 = arith.addf %26, %25 : vector<1x256xf32>
    %28 = arith.divf %26, %27 : vector<1x256xf32>
    %c0_18 = arith.constant 0 : index
    %c0_19 = arith.constant 0 : index
    %29 = vector.load %arg8[%c0_18, %c0_19] : memref<1x256xf32, #tpu.memory_space<vmem>>, vector<1x256xf32>
    tpu.vector_store %arg8[%c0_18, %c0_19], %28 {strides = array<i32>} : memref<1x256xf32, #tpu.memory_space<vmem>>, vector<1x256xf32>,
    return
  }
  func.func @transform_0(%arg0: i32) -> (i32, i32) {
    %c0_i32 = arith.constant 0 : i32
    %c0_i32_0 = arith.constant 0 : i32
    return %c0_i32, %arg0 : i32, i32
  }
  func.func @transform_1(%arg0: i32) -> (i32, i32) {
    %c0_i32 = arith.constant 0 : i32
    %c0_i32_0 = arith.constant 0 : i32
    %c0_i32_1 = arith.constant 0 : i32
    return %c0_i32, %c0_i32_0 : i32, i32
  }
  func.func @transform_2(%arg0: i32) -> (i32, i32) {
    %c0_i32 = arith.constant 0 : i32
    %c0_i32_0 = arith.constant 0 : i32
    %c0_i32_1 = arith.constant 0 : i32
    return %c0_i32, %c0_i32_0 : i32, i32
  }
  func.func @transform_3(%arg0: i32) -> (i32, i32) {
    %c0_i32 = arith.constant 0 : i32
    %c0_i32_0 = arith.constant 0 : i32
    %c0_i32_1 = arith.constant 0 : i32
    return %c0_i32, %c0_i32_0 : i32, i32
  }
  func.func @transform_4(%arg0: i32) -> (i32, i32) {
    %c0_i32 = arith.constant 0 : i32
    %c0_i32_0 = arith.constant 0 : i32
    %c0_i32_1 = arith.constant 0 : i32
    return %c0_i32, %c0_i32_0 : i32, i32
  }
  func.func @transform_5(%arg0: i32) -> (i32, i32) {
    %c0_i32 = arith.constant 0 : i32
    %c0_i32_0 = arith.constant 0 : i32
    %c0_i32_1 = arith.constant 0 : i32
    return %c0_i32, %c0_i32_0 : i32, i32
  }
  func.func @transform_6(%arg0: i32) -> (i32, i32) {
    %c0_i32 = arith.constant 0 : i32
    %c0_i32_0 = arith.constant 0 : i32
    %c0_i32_1 = arith.constant 0 : i32
    return %c0_i32, %c0_i32_0 : i32, i32
  }
  func.func @transform_7(%arg0: i32) -> (i32, i32) {
    %c0_i32 = arith.constant 0 : i32
    %c0_i32_0 = arith.constant 0 : i32
    return %c0_i32, %arg0 : i32, i32
  }
}

</mosaic_0001>

<llo_original>
// kernel: _lambda_.1
$region0: #{_lambda_.1}
  #allocation0 [shape = 'u32[]', space=smem, size = 0x4, offset = 0x4, fixed_abs, tag = 'smem constant byte address 0x4 - core index']
  #allocation1 [shape = 'u32[144,128]{1,0:T(1,128)}', space=vmem, size = 0x12000, scoped, tag = 'internal scratch']
  #allocation2 [shape = 'f32[1,1]{1,0:T(1,128)S(1)}', space=vmem, size = 0x200, scoped, tag = 'scoped memory for _lambda_.1']
  %s0 = inlined_call_operand.vmem [shape: bf16[32,256], index: 0, kind: input, shape index: {}]
  %s1 = inlined_call_operand.vmem [shape: bf16[256,32], index: 1, kind: input, shape index: {}]
  %s2 = inlined_call_operand.vmem [shape: f32[256,1], index: 2, kind: input, shape index: {}]
  %s3 = inlined_call_operand.vmem [shape: bf16[256,256], index: 3, kind: input, shape index: {}]
  %s4 = inlined_call_operand.vmem [shape: f32[256,1], index: 4, kind: input, shape index: {}]
  %s5 = inlined_call_operand.vmem [shape: bf16[1,256], index: 5, kind: input, shape index: {}]
  %s6 = inlined_call_operand.<no memory space> [shape: f32[1,1], index: 6, kind: input, shape index: {}]
  %s7 = inlined_call_operand.hbm [shape: f32[1,256], index: 7, kind: output, shape index: {}]
  %s8 = sld [smem:[#allocation0]]
  $region38: #{_lambda_.1} parent=0
    _
  %s10 = ssub.s32 1, %s8
  %s11 = scalar_select 0, %s10, %s8
  %v12 = vstv %s6
  %13 = vst [vmem:[#allocation2] sm:$0x1] %v12
  $region1: #{_lambda_.1} parent=0
    #allocation3 [shape = 'u8[1024]{0}', space=vmem, size = 0x400, scoped, tag = 'output window, operand 0, single buffered']
    #allocation4 [shape = 's32[1]{0}', space=sflag, size = 0x4, scoped, tag = 'scoped memory for _lambda_.1']
    %14 = vsyncpa [#allocation4], 0
    // Predicated region
    $region2: #{_lambda_.1} parent=1 // pred_check
      _
    $region3: #{_lambda_.1} parent=1 // pred_check_branch
      %16 = sbr.rel (0) target = $region5
    $region4: #{_lambda_.1} parent=1 // pred_region
      _
    $region5: #{_lambda_.1} parent=1 // pred_fallthru
      _
    // Predicated region
    $region6: #{_lambda_.1} parent=1 // pred_check
      _
    $region7: #{_lambda_.1} parent=1 // pred_check_branch
      %18 = sbr.rel (0) target = $region9
    $region8: #{_lambda_.1} parent=1 // pred_region
      _
    $region9: #{_lambda_.1} parent=1 // pred_fallthru
      _
    // Predicated region
    $region10: #{_lambda_.1} parent=1 // pred_check
      _
    $region11: #{_lambda_.1} parent=1 // pred_check_branch
      %20 = sbr.rel (0) target = $region13
    $region12: #{_lambda_.1} parent=1 // pred_region
      _
    $region13: #{_lambda_.1} parent=1 // pred_fallthru
      _
    // Predicated region
    $region14: #{_lambda_.1} parent=1 // pred_check
      _
    $region15: #{_lambda_.1} parent=1 // pred_check_branch
      %22 = sbr.rel (0) target = $region17
    $region16: #{_lambda_.1} parent=1 // pred_region
      _
    $region17: #{_lambda_.1} parent=1 // pred_fallthru
      _
    // Predicated region
    $region18: #{_lambda_.1} parent=1 // pred_check
      _
    $region19: #{_lambda_.1} parent=1 // pred_check_branch
      %24 = sbr.rel (0) target = $region21
    $region20: #{_lambda_.1} parent=1 // pred_region
      _
    $region21: #{_lambda_.1} parent=1 // pred_fallthru
      _
    // Predicated region
    $region22: #{_lambda_.1} parent=1 // pred_check
      _
    $region23: #{_lambda_.1} parent=1 // pred_check_branch
      %26 = sbr.rel (0) target = $region25
    $region24: #{_lambda_.1} parent=1 // pred_region
      _
    $region25: #{_lambda_.1} parent=1 // pred_fallthru
      _
    // Predicated region
    $region26: #{_lambda_.1} parent=1 // pred_check
      _
    $region27: #{_lambda_.1} parent=1 // pred_check_branch
      %28 = sbr.rel (0) target = $region29
    $region28: #{_lambda_.1} parent=1 // pred_region
      _
    $region29: #{_lambda_.1} parent=1 // pred_fallthru
      _
    %v30 = vld [vmem:[%s1] sm:$0xf]
    %v31 = vld [vmem:[%s1 + $0x4] sm:$0xf]
    %v32 = vld [vmem:[%s1 + $0x8] sm:$0xf]
    %v33 = vld [vmem:[%s1 + $0xc] sm:$0xf]
    %v34 = vld [vmem:[%s1 + $0x10] sm:$0xf]
    %v35 = vld [vmem:[%s1 + $0x14] sm:$0xf]
    %v36 = vld [vmem:[%s1 + $0x18] sm:$0xf]
    %v37 = vld [vmem:[%s1 + $0x1c] sm:$0xf]
    %v38 = vld [vmem:[%s1 + $0x20] sm:$0xf]
    %v39 = vld [vmem:[%s1 + $0x24] sm:$0xf]
    %v40 = vld [vmem:[%s1 + $0x28] sm:$0xf]
    %v41 = vld [vmem:[%s1 + $0x2c] sm:$0xf]
    %v42 = vld [vmem:[%s1 + $0x30] sm:$0xf]
    %v43 = vld [vmem:[%s1 + $0x34] sm:$0xf]
    %v44 = vld [vmem:[%s1 + $0x38] sm:$0xf]
    %v45 = vld [vmem:[%s1 + $0x3c] sm:$0xf]
    %v46 = vld [vmem:[%s1 + $0x40] sm:$0xf]
    %v47 = vld [vmem:[%s1 + $0x44] sm:$0xf]
    %v48 = vld [vmem:[%s1 + $0x48] sm:$0xf]
    %v49 = vld [vmem:[%s1 + $0x4c] sm:$0xf]
    %v50 = vld [vmem:[%s1 + $0x50] sm:$0xf]
    %v51 = vld [vmem:[%s1 + $0x54] sm:$0xf]
    %v52 = vld [vmem:[%s1 + $0x58] sm:$0xf]
    %v53 = vld [vmem:[%s1 + $0x5c] sm:$0xf]
    %v54 = vld [vmem:[%s1 + $0x60] sm:$0xf]
    %v55 = vld [vmem:[%s1 + $0x64] sm:$0xf]
    %v56 = vld [vmem:[%s1 + $0x68] sm:$0xf]
    %v57 = vld [vmem:[%s1 + $0x6c] sm:$0xf]
    %v58 = vld [vmem:[%s1 + $0x70] sm:$0xf]
    %v59 = vld [vmem:[%s1 + $0x74] sm:$0xf]
    %v60 = vld [vmem:[%s1 + $0x78] sm:$0xf]
    %v61 = vld [vmem:[%s1 + $0x7c] sm:$0xf]
    %v62 = vld [vmem:[%s0] sm:$0xff]
    %v63 = vld [vmem:[%s0 + $0x8] sm:$0xff]
    %v64 = vld [vmem:[%s0 + $0x10] sm:$0xff]
    %v65 = vld [vmem:[%s0 + $0x18] sm:$0xff]
    %v66 = vld [vmem:[%s2] sm:$0xff]
    %v67 = vld [vmem:[%s2 + $0x8] sm:$0xff]
    %v68 = vld [vmem:[%s2 + $0x10] sm:$0xff]
    %v69 = vld [vmem:[%s2 + $0x18] sm:$0xff]
    %v70 = vld [vmem:[%s2 + $0x20] sm:$0xff]
    %v71 = vld [vmem:[%s2 + $0x28] sm:$0xff]
    %v72 = vld [vmem:[%s2 + $0x30] sm:$0xff]
    %v73 = vld [vmem:[%s2 + $0x38] sm:$0xff]
    %v74 = vld [vmem:[%s2 + $0x40] sm:$0xff]
    %v75 = vld [vmem:[%s2 + $0x48] sm:$0xff]
    %v76 = vld [vmem:[%s2 + $0x50] sm:$0xff]
    %v77 = vld [vmem:[%s2 + $0x58] sm:$0xff]
    %v78 = vld [vmem:[%s2 + $0x60] sm:$0xff]
    %v79 = vld [vmem:[%s2 + $0x68] sm:$0xff]
    %v80 = vld [vmem:[%s2 + $0x70] sm:$0xff]
    %v81 = vld [vmem:[%s2 + $0x78] sm:$0xff]
    %v82 = vld [vmem:[%s2 + $0x80] sm:$0xff]
    %v83 = vld [vmem:[%s2 + $0x88] sm:$0xff]
    %v84 = vld [vmem:[%s2 + $0x90] sm:$0xff]
    %v85 = vld [vmem:[%s2 + $0x98] sm:$0xff]
    %v86 = vld [vmem:[%s2 + $0xa0] sm:$0xff]
    %v87 = vld [vmem:[%s2 + $0xa8] sm:$0xff]
    %v88 = vld [vmem:[%s2 + $0xb0] sm:$0xff]
    %v89 = vld [vmem:[%s2 + $0xb8] sm:$0xff]
    %v90 = vld [vmem:[%s2 + $0xc0] sm:$0xff]
    %v91 = vld [vmem:[%s2 + $0xc8] sm:$0xff]
    %v92 = vld [vmem:[%s2 + $0xd0] sm:$0xff]
    %v93 = vld [vmem:[%s2 + $0xd8] sm:$0xff]
    %v94 = vld [vmem:[%s2 + $0xe0] sm:$0xff]
    %v95 = vld [vmem:[%s2 + $0xe8] sm:$0xff]
    %v96 = vld [vmem:[%s2 + $0xf0] sm:$0xff]
    %v97 = vld [vmem:[%s2 + $0xf8] sm:$0xff]
    %99 = vset.pattern.permute.xlu0 0
    %100 = vperm.xlu0 %99, %v66
    %v101 = vpop.permute.xlu0 %100
    %104 = vset.pattern.permute.xlu0 0
    %105 = vperm.xlu0 %104, %v67
    %v106 = vpop.permute.xlu0 %105
    %109 = vset.pattern.permute.xlu0 0
    %110 = vperm.xlu0 %109, %v68
    %v111 = vpop.permute.xlu0 %110
    %114 = vset.pattern.permute.xlu0 0
    %115 = vperm.xlu0 %114, %v69
    %v116 = vpop.permute.xlu0 %115
    %119 = vset.pattern.permute.xlu0 0
    %120 = vperm.xlu0 %119, %v70
    %v121 = vpop.permute.xlu0 %120
    %124 = vset.pattern.permute.xlu0 0
    %125 = vperm.xlu0 %124, %v71
    %v126 = vpop.permute.xlu0 %125
    %129 = vset.pattern.permute.xlu0 0
    %130 = vperm.xlu0 %129, %v72
    %v131 = vpop.permute.xlu0 %130
    %134 = vset.pattern.permute.xlu0 0
    %135 = vperm.xlu0 %134, %v73
    %v136 = vpop.permute.xlu0 %135
    %139 = vset.pattern.permute.xlu0 0
    %140 = vperm.xlu0 %139, %v74
    %v141 = vpop.permute.xlu0 %140
    %144 = vset.pattern.permute.xlu0 0
    %145 = vperm.xlu0 %144, %v75
    %v146 = vpop.permute.xlu0 %145
    %149 = vset.pattern.permute.xlu0 0
    %150 = vperm.xlu0 %149, %v76
    %v151 = vpop.permute.xlu0 %150
    %154 = vset.pattern.permute.xlu0 0
    %155 = vperm.xlu0 %154, %v77
    %v156 = vpop.permute.xlu0 %155
    %159 = vset.pattern.permute.xlu0 0
    %160 = vperm.xlu0 %159, %v78
    %v161 = vpop.permute.xlu0 %160
    %164 = vset.pattern.permute.xlu0 0
    %165 = vperm.xlu0 %164, %v79
    %v166 = vpop.permute.xlu0 %165
    %169 = vset.pattern.permute.xlu0 0
    %170 = vperm.xlu0 %169, %v80
    %v171 = vpop.permute.xlu0 %170
    %174 = vset.pattern.permute.xlu0 0
    %175 = vperm.xlu0 %174, %v81
    %v176 = vpop.permute.xlu0 %175
    %179 = vset.pattern.permute.xlu0 0
    %180 = vperm.xlu0 %179, %v82
    %v181 = vpop.permute.xlu0 %180
    %184 = vset.pattern.permute.xlu0 0
    %185 = vperm.xlu0 %184, %v83
    %v186 = vpop.permute.xlu0 %185
    %189 = vset.pattern.permute.xlu0 0
    %190 = vperm.xlu0 %189, %v84
    %v191 = vpop.permute.xlu0 %190
    %194 = vset.pattern.permute.xlu0 0
    %195 = vperm.xlu0 %194, %v85
    %v196 = vpop.permute.xlu0 %195
    %199 = vset.pattern.permute.xlu0 0
    %200 = vperm.xlu0 %199, %v86
    %v201 = vpop.permute.xlu0 %200
    %204 = vset.pattern.permute.xlu0 0
    %205 = vperm.xlu0 %204, %v87
    %v206 = vpop.permute.xlu0 %205
    %209 = vset.pattern.permute.xlu0 0
    %210 = vperm.xlu0 %209, %v88
    %v211 = vpop.permute.xlu0 %210
    %214 = vset.pattern.permute.xlu0 0
    %215 = vperm.xlu0 %214, %v89
    %v216 = vpop.permute.xlu0 %215
    %219 = vset.pattern.permute.xlu0 0
    %220 = vperm.xlu0 %219, %v90
    %v221 = vpop.permute.xlu0 %220
    %224 = vset.pattern.permute.xlu0 0
    %225 = vperm.xlu0 %224, %v91
    %v226 = vpop.permute.xlu0 %225
    %229 = vset.pattern.permute.xlu0 0
    %230 = vperm.xlu0 %229, %v92
    %v231 = vpop.permute.xlu0 %230
    %234 = vset.pattern.permute.xlu0 0
    %235 = vperm.xlu0 %234, %v93
    %v236 = vpop.permute.xlu0 %235
    %239 = vset.pattern.permute.xlu0 0
    %240 = vperm.xlu0 %239, %v94
    %v241 = vpop.permute.xlu0 %240
    %244 = vset.pattern.permute.xlu0 0
    %245 = vperm.xlu0 %244, %v95
    %v246 = vpop.permute.xlu0 %245
    %249 = vset.pattern.permute.xlu0 0
    %250 = vperm.xlu0 %249, %v96
    %v251 = vpop.permute.xlu0 %250
    %254 = vset.pattern.permute.xlu0 0
    %255 = vperm.xlu0 %254, %v97
    %v256 = vpop.permute.xlu0 %255
    %v290 = vunpack.c.l.b16 %v30
    %v291 = vunpack.c.l.b16 %v31
    %v292 = vunpack.c.l.b16 %v32
    %v293 = vunpack.c.l.b16 %v33
    %v294 = vunpack.c.l.b16 %v34
    %v295 = vunpack.c.l.b16 %v35
    %v296 = vunpack.c.l.b16 %v36
    %v297 = vunpack.c.l.b16 %v37
    %v298 = vunpack.c.l.b16 %v38
    %v299 = vunpack.c.l.b16 %v39
    %v300 = vunpack.c.l.b16 %v40
    %v301 = vunpack.c.l.b16 %v41
    %v302 = vunpack.c.l.b16 %v42
    %v303 = vunpack.c.l.b16 %v43
    %v304 = vunpack.c.l.b16 %v44
    %v305 = vunpack.c.l.b16 %v45
    %v306 = vunpack.c.l.b16 %v46
    %v307 = vunpack.c.l.b16 %v47
    %v308 = vunpack.c.l.b16 %v48
    %v309 = vunpack.c.l.b16 %v49
    %v310 = vunpack.c.l.b16 %v50
    %v311 = vunpack.c.l.b16 %v51
    %v312 = vunpack.c.l.b16 %v52
    %v313 = vunpack.c.l.b16 %v53
    %v314 = vunpack.c.l.b16 %v54
    %v315 = vunpack.c.l.b16 %v55
    %v316 = vunpack.c.l.b16 %v56
    %v317 = vunpack.c.l.b16 %v57
    %v318 = vunpack.c.l.b16 %v58
    %v319 = vunpack.c.l.b16 %v59
    %v320 = vunpack.c.l.b16 %v60
    %v321 = vunpack.c.l.b16 %v61
    %v322 = vpack.c.b16 %v291, %v290
    %v323 = vpack.c.b16 %v293, %v292
    %v324 = vpack.c.b16 %v295, %v294
    %v325 = vpack.c.b16 %v297, %v296
    %v326 = vpack.c.b16 %v299, %v298
    %v327 = vpack.c.b16 %v301, %v300
    %v328 = vpack.c.b16 %v303, %v302
    %v329 = vpack.c.b16 %v305, %v304
    %v330 = vpack.c.b16 %v307, %v306
    %v331 = vpack.c.b16 %v309, %v308
    %v332 = vpack.c.b16 %v311, %v310
    %v333 = vpack.c.b16 %v313, %v312
    %v334 = vpack.c.b16 %v315, %v314
    %v335 = vpack.c.b16 %v317, %v316
    %v336 = vpack.c.b16 %v319, %v318
    %v337 = vpack.c.b16 %v321, %v320
    %v342 = vunpack.c.l.b16 %v62
    %v343 = vunpack.c.h.b16 %v62
    %v344 = vunpack.c.l.b16 %v63
    %v345 = vunpack.c.h.b16 %v63
    %v346 = vunpack.c.l.b16 %v64
    %v347 = vunpack.c.h.b16 %v64
    %v348 = vunpack.c.l.b16 %v65
    %v349 = vunpack.c.h.b16 %v65
    %v350 = vpack.c.b16 %v344, %v342
    %v351 = vpack.c.b16 %v345, %v343
    %v352 = vpack.c.b16 %v348, %v346
    %v353 = vpack.c.b16 %v349, %v347
    %vm358 = vcmask 261120
    %v360 = vsel %vm358, %v322, 0
    %v363 = vsel %vm358, %v323, 0
    %v366 = vsel %vm358, %v324, 0
    %v369 = vsel %vm358, %v325, 0
    %v372 = vsel %vm358, %v326, 0
    %v375 = vsel %vm358, %v327, 0
    %v378 = vsel %vm358, %v328, 0
    %v381 = vsel %vm358, %v329, 0
    %v384 = vsel %vm358, %v330, 0
    %v387 = vsel %vm358, %v331, 0
    %v390 = vsel %vm358, %v332, 0
    %v393 = vsel %vm358, %v333, 0
    %v396 = vsel %vm358, %v334, 0
    %v399 = vsel %vm358, %v335, 0
    %v402 = vsel %vm358, %v336, 0
    %v405 = vsel %vm358, %v337, 0
    %407 = vmatprep.subr.bf16.mxu0 0
    %408 = vmatpush1.bf16.msra.mxu0 0
    %409 = vmatprep.subr.bf16.mxu0 0
    %410 = vmatpush1.bf16.msra.mxu0 0
    %411 = vmatprep.subr.bf16.mxu0 0
    %412 = vmatpush1.bf16.msra.mxu0 0
    %413 = vmatprep.subr.bf16.mxu0 0
    %414 = vmatpush1.bf16.msra.mxu0 0
    %415 = vmatprep.subr.bf16.mxu0 0
    %416 = vmatpush1.bf16.msra.mxu0 0
    %417 = vmatprep.subr.bf16.mxu0 0
    %418 = vmatpush1.bf16.msra.mxu0 0
    %419 = vmatprep.subr.bf16.mxu0 %v353
    %420 = vmatpush1.bf16.msra.mxu0 %v352
    %421 = vmatprep.subr.bf16.mxu0 %v351
    %422 = vmatpush1.bf16.msra.mxu0 %v350
    %423 = vmatprep.subr.bf16.mxu0 0
    %424 = vmatpush2.bf16.msra.mxu0 0
    %425 = vmatprep.subr.bf16.mxu0 0
    %426 = vmatpush2.bf16.msra.mxu0 0
    %427 = vmatprep.subr.bf16.mxu0 0
    %428 = vmatpush2.bf16.msra.mxu0 0
    %429 = vmatprep.subr.bf16.mxu0 0
    %430 = vmatpush2.bf16.msra.mxu0 0
    %431 = vmatprep.subr.bf16.mxu0 0
    %432 = vmatpush2.bf16.msra.mxu0 0
    %433 = vmatprep.subr.bf16.mxu0 0
    %434 = vmatpush2.bf16.msra.mxu0 0
    %435 = vmatprep.subr.bf16.mxu0 0
    %436 = vmatpush2.bf16.msra.mxu0 0
    %437 = vmatprep.subr.bf16.mxu0 0
    %438 = vmatpush2.bf16.msra.mxu0 0
    %439 = vmatprep.mubr.bf16.mxu0 0
    %440 = vmatmul.mubr.bf16.gmra.mxu0 %v360
    %v441 = vpop.f32.mrf.mxu0
    %v442 = vadd.f32 %v101, %v441
    %v443 = vpop.f32.mrf.mxu0
    %v444 = vadd.f32 %v101, %v443
    %v445 = vpop.f32.mrf.mxu0
    %v446 = vadd.f32 %v106, %v445
    %v447 = vpop.f32.mrf.mxu0
    %v448 = vadd.f32 %v106, %v447
    %449 = vmatprep.mubr.bf16.mxu0 0
    %450 = vmatmul.mubr.bf16.gmra.mxu0 %v363
    %v451 = vpop.f32.mrf.mxu0
    %v452 = vadd.f32 %v111, %v451
    %v453 = vpop.f32.mrf.mxu0
    %v454 = vadd.f32 %v111, %v453
    %v455 = vpop.f32.mrf.mxu0
    %v456 = vadd.f32 %v116, %v455
    %v457 = vpop.f32.mrf.mxu0
    %v458 = vadd.f32 %v116, %v457
    %459 = vmatprep.mubr.bf16.mxu0 0
    %460 = vmatmul.mubr.bf16.gmra.mxu0 %v366
    %v461 = vpop.f32.mrf.mxu0
    %v462 = vadd.f32 %v121, %v461
    %v463 = vpop.f32.mrf.mxu0
    %v464 = vadd.f32 %v121, %v463
    %v465 = vpop.f32.mrf.mxu0
    %v466 = vadd.f32 %v126, %v465
    %v467 = vpop.f32.mrf.mxu0
    %v468 = vadd.f32 %v126, %v467
    %469 = vmatprep.mubr.bf16.mxu0 0
    %470 = vmatmul.mubr.bf16.gmra.mxu0 %v369
    %v471 = vpop.f32.mrf.mxu0
    %v472 = vadd.f32 %v131, %v471
    %v473 = vpop.f32.mrf.mxu0
    %v474 = vadd.f32 %v131, %v473
    %v475 = vpop.f32.mrf.mxu0
    %v476 = vadd.f32 %v136, %v475
    %v477 = vpop.f32.mrf.mxu0
    %v478 = vadd.f32 %v136, %v477
    %479 = vmatprep.mubr.bf16.mxu0 0
    %480 = vmatmul.mubr.bf16.gmra.mxu0 %v372
    %v481 = vpop.f32.mrf.mxu0
    %v482 = vadd.f32 %v141, %v481
    %v483 = vpop.f32.mrf.mxu0
    %v484 = vadd.f32 %v141, %v483
    %v485 = vpop.f32.mrf.mxu0
    %v486 = vadd.f32 %v146, %v485
    %v487 = vpop.f32.mrf.mxu0
    %v488 = vadd.f32 %v146, %v487
    %489 = vmatprep.mubr.bf16.mxu0 0
    %490 = vmatmul.mubr.bf16.gmra.mxu0 %v375
    %v491 = vpop.f32.mrf.mxu0
    %v492 = vadd.f32 %v151, %v491
    %v493 = vpop.f32.mrf.mxu0
    %v494 = vadd.f32 %v151, %v493
    %v495 = vpop.f32.mrf.mxu0
    %v496 = vadd.f32 %v156, %v495
    %v497 = vpop.f32.mrf.mxu0
    %v498 = vadd.f32 %v156, %v497
    %499 = vmatprep.mubr.bf16.mxu0 0
    %500 = vmatmul.mubr.bf16.gmra.mxu0 %v378
    %v501 = vpop.f32.mrf.mxu0
    %v502 = vadd.f32 %v161, %v501
    %v503 = vpop.f32.mrf.mxu0
    %v504 = vadd.f32 %v161, %v503
    %v505 = vpop.f32.mrf.mxu0
    %v506 = vadd.f32 %v166, %v505
    %v507 = vpop.f32.mrf.mxu0
    %v508 = vadd.f32 %v166, %v507
    %509 = vmatprep.mubr.bf16.mxu0 0
    %510 = vmatmul.mubr.bf16.gmra.mxu0 %v381
    %v511 = vpop.f32.mrf.mxu0
    %v512 = vadd.f32 %v171, %v511
    %v513 = vpop.f32.mrf.mxu0
    %v514 = vadd.f32 %v171, %v513
    %v515 = vpop.f32.mrf.mxu0
    %v516 = vadd.f32 %v176, %v515
    %v517 = vpop.f32.mrf.mxu0
    %v518 = vadd.f32 %v176, %v517
    %519 = vmatprep.mubr.bf16.mxu0 0
    %520 = vmatmul.mubr.bf16.gmra.mxu0 %v384
    %v521 = vpop.f32.mrf.mxu0
    %v522 = vadd.f32 %v181, %v521
    %v523 = vpop.f32.mrf.mxu0
    %v524 = vadd.f32 %v181, %v523
    %v525 = vpop.f32.mrf.mxu0
    %v526 = vadd.f32 %v186, %v525
    %v527 = vpop.f32.mrf.mxu0
    %v528 = vadd.f32 %v186, %v527
    %529 = vmatprep.mubr.bf16.mxu0 0
    %530 = vmatmul.mubr.bf16.gmra.mxu0 %v387
    %v531 = vpop.f32.mrf.mxu0
    %v532 = vadd.f32 %v191, %v531
    %v533 = vpop.f32.mrf.mxu0
    %v534 = vadd.f32 %v191, %v533
    %v535 = vpop.f32.mrf.mxu0
    %v536 = vadd.f32 %v196, %v535
    %v537 = vpop.f32.mrf.mxu0
    %v538 = vadd.f32 %v196, %v537
    %539 = vmatprep.mubr.bf16.mxu0 0
    %540 = vmatmul.mubr.bf16.gmra.mxu0 %v390
    %v541 = vpop.f32.mrf.mxu0
    %v542 = vadd.f32 %v201, %v541
    %v543 = vpop.f32.mrf.mxu0
    %v544 = vadd.f32 %v201, %v543
    %v545 = vpop.f32.mrf.mxu0
    %v546 = vadd.f32 %v206, %v545
    %v547 = vpop.f32.mrf.mxu0
    %v548 = vadd.f32 %v206, %v547
    %549 = vmatprep.mubr.bf16.mxu0 0
    %550 = vmatmul.mubr.bf16.gmra.mxu0 %v393
    %v551 = vpop.f32.mrf.mxu0
    %v552 = vadd.f32 %v211, %v551
    %v553 = vpop.f32.mrf.mxu0
    %v554 = vadd.f32 %v211, %v553
    %v555 = vpop.f32.mrf.mxu0
    %v556 = vadd.f32 %v216, %v555
    %v557 = vpop.f32.mrf.mxu0
    %v558 = vadd.f32 %v216, %v557
    %559 = vmatprep.mubr.bf16.mxu0 0
    %560 = vmatmul.mubr.bf16.gmra.mxu0 %v396
    %v561 = vpop.f32.mrf.mxu0
    %v562 = vadd.f32 %v221, %v561
    %v563 = vpop.f32.mrf.mxu0
    %v564 = vadd.f32 %v221, %v563
    %v565 = vpop.f32.mrf.mxu0
    %v566 = vadd.f32 %v226, %v565
    %v567 = vpop.f32.mrf.mxu0
    %v568 = vadd.f32 %v226, %v567
    %569 = vmatprep.mubr.bf16.mxu0 0
    %570 = vmatmul.mubr.bf16.gmra.mxu0 %v399
    %v571 = vpop.f32.mrf.mxu0
    %v572 = vadd.f32 %v231, %v571
    %v573 = vpop.f32.mrf.mxu0
    %v574 = vadd.f32 %v231, %v573
    %v575 = vpop.f32.mrf.mxu0
    %v576 = vadd.f32 %v236, %v575
    %v577 = vpop.f32.mrf.mxu0
    %v578 = vadd.f32 %v236, %v577
    %579 = vmatprep.mubr.bf16.mxu0 0
    %580 = vmatmul.mubr.bf16.gmra.mxu0 %v402
    %v581 = vpop.f32.mrf.mxu0
    %v582 = vadd.f32 %v241, %v581
    %v583 = vpop.f32.mrf.mxu0
    %v584 = vadd.f32 %v241, %v583
    %v585 = vpop.f32.mrf.mxu0
    %v586 = vadd.f32 %v246, %v585
    %v587 = vpop.f32.mrf.mxu0
    %v588 = vadd.f32 %v246, %v587
    %589 = vmatprep.mubr.bf16.mxu0 0
    %590 = vmatmul.mubr.bf16.gmra.mxu0 %v405
    %v591 = vpop.f32.mrf.mxu0
    %v592 = vadd.f32 %v251, %v591
    %v593 = vpop.f32.mrf.mxu0
    %v594 = vadd.f32 %v251, %v593
    %v595 = vpop.f32.mrf.mxu0
    %v596 = vadd.f32 %v256, %v595
    %v597 = vpop.f32.mrf.mxu0
    %v598 = vadd.f32 %v256, %v597
    %599 = vdwg.mxu0
    %v600 = vmul.f32 %v442, 0.2
    %v601 = vmul.f32 %v444, 0.2
    %v602 = vmul.f32 %v446, 0.2
    %v603 = vmul.f32 %v448, 0.2
    %v604 = vmul.f32 %v452, 0.2
    %v605 = vmul.f32 %v454, 0.2
    %v606 = vmul.f32 %v456, 0.2
    %v607 = vmul.f32 %v458, 0.2
    %v608 = vmul.f32 %v462, 0.2
    %v609 = vmul.f32 %v464, 0.2
    %v610 = vmul.f32 %v466, 0.2
    %v611 = vmul.f32 %v468, 0.2
    %v612 = vmul.f32 %v472, 0.2
    %v613 = vmul.f32 %v474, 0.2
    %v614 = vmul.f32 %v476, 0.2
    %v615 = vmul.f32 %v478, 0.2
    %v616 = vmul.f32 %v482, 0.2
    %v617 = vmul.f32 %v484, 0.2
    %v618 = vmul.f32 %v486, 0.2
    %v619 = vmul.f32 %v488, 0.2
    %v620 = vmul.f32 %v492, 0.2
    %v621 = vmul.f32 %v494, 0.2
    %v622 = vmul.f32 %v496, 0.2
    %v623 = vmul.f32 %v498, 0.2
    %v624 = vmul.f32 %v502, 0.2
    %v625 = vmul.f32 %v504, 0.2
    %v626 = vmul.f32 %v506, 0.2
    %v627 = vmul.f32 %v508, 0.2
    %v628 = vmul.f32 %v512, 0.2
    %v629 = vmul.f32 %v514, 0.2
    %v630 = vmul.f32 %v516, 0.2
    %v631 = vmul.f32 %v518, 0.2
    %v632 = vmul.f32 %v522, 0.2
    %v633 = vmul.f32 %v524, 0.2
    %v634 = vmul.f32 %v526, 0.2
    %v635 = vmul.f32 %v528, 0.2
    %v636 = vmul.f32 %v532, 0.2
    %v637 = vmul.f32 %v534, 0.2
    %v638 = vmul.f32 %v536, 0.2
    %v639 = vmul.f32 %v538, 0.2
    %v640 = vmul.f32 %v542, 0.2
    %v641 = vmul.f32 %v544, 0.2
    %v642 = vmul.f32 %v546, 0.2
    %v643 = vmul.f32 %v548, 0.2
    %v644 = vmul.f32 %v552, 0.2
    %v645 = vmul.f32 %v554, 0.2
    %v646 = vmul.f32 %v556, 0.2
    %v647 = vmul.f32 %v558, 0.2
    %v648 = vmul.f32 %v562, 0.2
    %v649 = vmul.f32 %v564, 0.2
    %v650 = vmul.f32 %v566, 0.2
    %v651 = vmul.f32 %v568, 0.2
    %v652 = vmul.f32 %v572, 0.2
    %v653 = vmul.f32 %v574, 0.2
    %v654 = vmul.f32 %v576, 0.2
    %v655 = vmul.f32 %v578, 0.2
    %v656 = vmul.f32 %v582, 0.2
    %v657 = vmul.f32 %v584, 0.2
    %v658 = vmul.f32 %v586, 0.2
    %v659 = vmul.f32 %v588, 0.2
    %v660 = vmul.f32 %v592, 0.2
    %v661 = vmul.f32 %v594, 0.2
    %v662 = vmul.f32 %v596, 0.2
    %v663 = vmul.f32 %v598, 0.2
    %v664 = vmax.f32 %v442, %v600
    %v665 = vmax.f32 %v444, %v601
    %v666 = vmax.f32 %v446, %v602
    %v667 = vmax.f32 %v448, %v603
    %v668 = vmax.f32 %v452, %v604
    %v669 = vmax.f32 %v454, %v605
    %v670 = vmax.f32 %v456, %v606
    %v671 = vmax.f32 %v458, %v607
    %v672 = vmax.f32 %v462, %v608
    %v673 = vmax.f32 %v464, %v609
    %v674 = vmax.f32 %v466, %v610
    %v675 = vmax.f32 %v468, %v611
    %v676 = vmax.f32 %v472, %v612
    %v677 = vmax.f32 %v474, %v613
    %v678 = vmax.f32 %v476, %v614
    %v679 = vmax.f32 %v478, %v615
    %v680 = vmax.f32 %v482, %v616
    %v681 = vmax.f32 %v484, %v617
    %v682 = vmax.f32 %v486, %v618
    %v683 = vmax.f32 %v488, %v619
    %v684 = vmax.f32 %v492, %v620
    %v685 = vmax.f32 %v494, %v621
    %v686 = vmax.f32 %v496, %v622
    %v687 = vmax.f32 %v498, %v623
    %v688 = vmax.f32 %v502, %v624
    %v689 = vmax.f32 %v504, %v625
    %v690 = vmax.f32 %v506, %v626
    %v691 = vmax.f32 %v508, %v627
    %v692 = vmax.f32 %v512, %v628
    %v693 = vmax.f32 %v514, %v629
    %v694 = vmax.f32 %v516, %v630
    %v695 = vmax.f32 %v518, %v631
    %v696 = vmax.f32 %v522, %v632
    %v697 = vmax.f32 %v524, %v633
    %v698 = vmax.f32 %v526, %v634
    %v699 = vmax.f32 %v528, %v635
    %v700 = vmax.f32 %v532, %v636
    %v701 = vmax.f32 %v534, %v637
    %v702 = vmax.f32 %v536, %v638
    %v703 = vmax.f32 %v538, %v639
    %v704 = vmax.f32 %v542, %v640
    %v705 = vmax.f32 %v544, %v641
    %v706 = vmax.f32 %v546, %v642
    %v707 = vmax.f32 %v548, %v643
    %v708 = vmax.f32 %v552, %v644
    %v709 = vmax.f32 %v554, %v645
    %v710 = vmax.f32 %v556, %v646
    %v711 = vmax.f32 %v558, %v647
    %v712 = vmax.f32 %v562, %v648
    %v713 = vmax.f32 %v564, %v649
    %v714 = vmax.f32 %v566, %v650
    %v715 = vmax.f32 %v568, %v651
    %v716 = vmax.f32 %v572, %v652
    %v717 = vmax.f32 %v574, %v653
    %v718 = vmax.f32 %v576, %v654
    %v719 = vmax.f32 %v578, %v655
    %v720 = vmax.f32 %v582, %v656
    %v721 = vmax.f32 %v584, %v657
    %v722 = vmax.f32 %v586, %v658
    %v723 = vmax.f32 %v588, %v659
    %v724 = vmax.f32 %v592, %v660
    %v725 = vmax.f32 %v594, %v661
    %v726 = vmax.f32 %v596, %v662
    %v727 = vmax.f32 %v598, %v663
    %v728 = vld [vmem:[%s3] sm:$0xff]
    %v729 = vld [vmem:[%s3 + $0x8] sm:$0xff]
    %v730 = vld [vmem:[%s3 + $0x10] sm:$0xff]
    %v731 = vld [vmem:[%s3 + $0x18] sm:$0xff]
    %v732 = vld [vmem:[%s3 + $0x20] sm:$0xff]
    %v733 = vld [vmem:[%s3 + $0x28] sm:$0xff]
    %v734 = vld [vmem:[%s3 + $0x30] sm:$0xff]
    %v735 = vld [vmem:[%s3 + $0x38] sm:$0xff]
    %v736 = vld [vmem:[%s3 + $0x40] sm:$0xff]
    %v737 = vld [vmem:[%s3 + $0x48] sm:$0xff]
    %v738 = vld [vmem:[%s3 + $0x50] sm:$0xff]
    %v739 = vld [vmem:[%s3 + $0x58] sm:$0xff]
    %v740 = vld [vmem:[%s3 + $0x60] sm:$0xff]
    %v741 = vld [vmem:[%s3 + $0x68] sm:$0xff]
    %v742 = vld [vmem:[%s3 + $0x70] sm:$0xff]
    %v743 = vld [vmem:[%s3 + $0x78] sm:$0xff]
    %v744 = vld [vmem:[%s3 + $0x80] sm:$0xff]
    %v745 = vld [vmem:[%s3 + $0x88] sm:$0xff]
    %v746 = vld [vmem:[%s3 + $0x90] sm:$0xff]
    %v747 = vld [vmem:[%s3 + $0x98] sm:$0xff]
    %v748 = vld [vmem:[%s3 + $0xa0] sm:$0xff]
    %v749 = vld [vmem:[%s3 + $0xa8] sm:$0xff]
    %v750 = vld [vmem:[%s3 + $0xb0] sm:$0xff]
    %v751 = vld [vmem:[%s3 + $0xb8] sm:$0xff]
    %v752 = vld [vmem:[%s3 + $0xc0] sm:$0xff]
    %v753 = vld [vmem:[%s3 + $0xc8] sm:$0xff]
    %v754 = vld [vmem:[%s3 + $0xd0] sm:$0xff]
    %v755 = vld [vmem:[%s3 + $0xd8] sm:$0xff]
    %v756 = vld [vmem:[%s3 + $0xe0] sm:$0xff]
    %v757 = vld [vmem:[%s3 + $0xe8] sm:$0xff]
    %v758 = vld [vmem:[%s3 + $0xf0] sm:$0xff]
    %v759 = vld [vmem:[%s3 + $0xf8] sm:$0xff]
    %v760 = vpack.c.bf16 %v666, %v664
    %v761 = vpack.c.bf16 %v667, %v665
    %v762 = vpack.c.bf16 %v670, %v668
    %v763 = vpack.c.bf16 %v671, %v669
    %v764 = vpack.c.bf16 %v674, %v672
    %v765 = vpack.c.bf16 %v675, %v673
    %v766 = vpack.c.bf16 %v678, %v676
    %v767 = vpack.c.bf16 %v679, %v677
    %v768 = vpack.c.bf16 %v682, %v680
    %v769 = vpack.c.bf16 %v683, %v681
    %v770 = vpack.c.bf16 %v686, %v684
    %v771 = vpack.c.bf16 %v687, %v685
    %v772 = vpack.c.bf16 %v690, %v688
    %v773 = vpack.c.bf16 %v691, %v689
    %v774 = vpack.c.bf16 %v694, %v692
    %v775 = vpack.c.bf16 %v695, %v693
    %v776 = vpack.c.bf16 %v698, %v696
    %v777 = vpack.c.bf16 %v699, %v697
    %v778 = vpack.c.bf16 %v702, %v700
    %v779 = vpack.c.bf16 %v703, %v701
    %v780 = vpack.c.bf16 %v706, %v704
    %v781 = vpack.c.bf16 %v707, %v705
    %v782 = vpack.c.bf16 %v710, %v708
    %v783 = vpack.c.bf16 %v711, %v709
    %v784 = vpack.c.bf16 %v714, %v712
    %v785 = vpack.c.bf16 %v715, %v713
    %v786 = vpack.c.bf16 %v718, %v716
    %v787 = vpack.c.bf16 %v719, %v717
    %v788 = vpack.c.bf16 %v722, %v720
    %v789 = vpack.c.bf16 %v723, %v721
    %v790 = vpack.c.bf16 %v726, %v724
    %v791 = vpack.c.bf16 %v727, %v725
    %v792 = vld [vmem:[%s4] sm:$0xff]
    %v793 = vld [vmem:[%s4 + $0x8] sm:$0xff]
    %v794 = vld [vmem:[%s4 + $0x10] sm:$0xff]
    %v795 = vld [vmem:[%s4 + $0x18] sm:$0xff]
    %v796 = vld [vmem:[%s4 + $0x20] sm:$0xff]
    %v797 = vld [vmem:[%s4 + $0x28] sm:$0xff]
    %v798 = vld [vmem:[%s4 + $0x30] sm:$0xff]
    %v799 = vld [vmem:[%s4 + $0x38] sm:$0xff]
    %v800 = vld [vmem:[%s4 + $0x40] sm:$0xff]
    %v801 = vld [vmem:[%s4 + $0x48] sm:$0xff]
    %v802 = vld [vmem:[%s4 + $0x50] sm:$0xff]
    %v803 = vld [vmem:[%s4 + $0x58] sm:$0xff]
    %v804 = vld [vmem:[%s4 + $0x60] sm:$0xff]
    %v805 = vld [vmem:[%s4 + $0x68] sm:$0xff]
    %v806 = vld [vmem:[%s4 + $0x70] sm:$0xff]
    %v807 = vld [vmem:[%s4 + $0x78] sm:$0xff]
    %v808 = vld [vmem:[%s4 + $0x80] sm:$0xff]
    %v809 = vld [vmem:[%s4 + $0x88] sm:$0xff]
    %v810 = vld [vmem:[%s4 + $0x90] sm:$0xff]
    %v811 = vld [vmem:[%s4 + $0x98] sm:$0xff]
    %v812 = vld [vmem:[%s4 + $0xa0] sm:$0xff]
    %v813 = vld [vmem:[%s4 + $0xa8] sm:$0xff]
    %v814 = vld [vmem:[%s4 + $0xb0] sm:$0xff]
    %v815 = vld [vmem:[%s4 + $0xb8] sm:$0xff]
    %v816 = vld [vmem:[%s4 + $0xc0] sm:$0xff]
    %v817 = vld [vmem:[%s4 + $0xc8] sm:$0xff]
    %v818 = vld [vmem:[%s4 + $0xd0] sm:$0xff]
    %v819 = vld [vmem:[%s4 + $0xd8] sm:$0xff]
    %v820 = vld [vmem:[%s4 + $0xe0] sm:$0xff]
    %v821 = vld [vmem:[%s4 + $0xe8] sm:$0xff]
    %v822 = vld [vmem:[%s4 + $0xf0] sm:$0xff]
    %v823 = vld [vmem:[%s4 + $0xf8] sm:$0xff]
    %825 = vset.pattern.permute.xlu0 0
    %826 = vperm.xlu0 %825, %v792
    %v827 = vpop.permute.xlu0 %826
    %830 = vset.pattern.permute.xlu0 0
    %831 = vperm.xlu0 %830, %v793
    %v832 = vpop.permute.xlu0 %831
    %835 = vset.pattern.permute.xlu0 0
    %836 = vperm.xlu0 %835, %v794
    %v837 = vpop.permute.xlu0 %836
    %840 = vset.pattern.permute.xlu0 0
    %841 = vperm.xlu0 %840, %v795
    %v842 = vpop.permute.xlu0 %841
    %845 = vset.pattern.permute.xlu0 0
    %846 = vperm.xlu0 %845, %v796
    %v847 = vpop.permute.xlu0 %846
    %850 = vset.pattern.permute.xlu0 0
    %851 = vperm.xlu0 %850, %v797
    %v852 = vpop.permute.xlu0 %851
    %855 = vset.pattern.permute.xlu0 0
    %856 = vperm.xlu0 %855, %v798
    %v857 = vpop.permute.xlu0 %856
    %860 = vset.pattern.permute.xlu0 0
    %861 = vperm.xlu0 %860, %v799
    %v862 = vpop.permute.xlu0 %861
    %865 = vset.pattern.permute.xlu0 0
    %866 = vperm.xlu0 %865, %v800
    %v867 = vpop.permute.xlu0 %866
    %870 = vset.pattern.permute.xlu0 0
    %871 = vperm.xlu0 %870, %v801
    %v872 = vpop.permute.xlu0 %871
    %875 = vset.pattern.permute.xlu0 0
    %876 = vperm.xlu0 %875, %v802
    %v877 = vpop.permute.xlu0 %876
    %880 = vset.pattern.permute.xlu0 0
    %881 = vperm.xlu0 %880, %v803
    %v882 = vpop.permute.xlu0 %881
    %885 = vset.pattern.permute.xlu0 0
    %886 = vperm.xlu0 %885, %v804
    %v887 = vpop.permute.xlu0 %886
    %890 = vset.pattern.permute.xlu0 0
    %891 = vperm.xlu0 %890, %v805
    %v892 = vpop.permute.xlu0 %891
    %895 = vset.pattern.permute.xlu0 0
    %896 = vperm.xlu0 %895, %v806
    %v897 = vpop.permute.xlu0 %896
    %900 = vset.pattern.permute.xlu0 0
    %901 = vperm.xlu0 %900, %v807
    %v902 = vpop.permute.xlu0 %901
    %905 = vset.pattern.permute.xlu0 0
    %906 = vperm.xlu0 %905, %v808
    %v907 = vpop.permute.xlu0 %906
    %910 = vset.pattern.permute.xlu0 0
    %911 = vperm.xlu0 %910, %v809
    %v912 = vpop.permute.xlu0 %911
    %915 = vset.pattern.permute.xlu0 0
    %916 = vperm.xlu0 %915, %v810
    %v917 = vpop.permute.xlu0 %916
    %920 = vset.pattern.permute.xlu0 0
    %921 = vperm.xlu0 %920, %v811
    %v922 = vpop.permute.xlu0 %921
    %925 = vset.pattern.permute.xlu0 0
    %926 = vperm.xlu0 %925, %v812
    %v927 = vpop.permute.xlu0 %926
    %930 = vset.pattern.permute.xlu0 0
    %931 = vperm.xlu0 %930, %v813
    %v932 = vpop.permute.xlu0 %931
    %935 = vset.pattern.permute.xlu0 0
    %936 = vperm.xlu0 %935, %v814
    %v937 = vpop.permute.xlu0 %936
    %940 = vset.pattern.permute.xlu0 0
    %941 = vperm.xlu0 %940, %v815
    %v942 = vpop.permute.xlu0 %941
    %945 = vset.pattern.permute.xlu0 0
    %946 = vperm.xlu0 %945, %v816
    %v947 = vpop.permute.xlu0 %946
    %950 = vset.pattern.permute.xlu0 0
    %951 = vperm.xlu0 %950, %v817
    %v952 = vpop.permute.xlu0 %951
    %955 = vset.pattern.permute.xlu0 0
    %956 = vperm.xlu0 %955, %v818
    %v957 = vpop.permute.xlu0 %956
    %960 = vset.pattern.permute.xlu0 0
    %961 = vperm.xlu0 %960, %v819
    %v962 = vpop.permute.xlu0 %961
    %965 = vset.pattern.permute.xlu0 0
    %966 = vperm.xlu0 %965, %v820
    %v967 = vpop.permute.xlu0 %966
    %970 = vset.pattern.permute.xlu0 0
    %971 = vperm.xlu0 %970, %v821
    %v972 = vpop.permute.xlu0 %971
    %975 = vset.pattern.permute.xlu0 0
    %976 = vperm.xlu0 %975, %v822
    %v977 = vpop.permute.xlu0 %976
    %980 = vset.pattern.permute.xlu0 0
    %981 = vperm.xlu0 %980, %v823
    %v982 = vpop.permute.xlu0 %981
    %v1016 = vunpack.c.l.b16 %v728
    %v1017 = vunpack.c.h.b16 %v728
    %v1018 = vunpack.c.l.b16 %v729
    %v1019 = vunpack.c.h.b16 %v729
    %v1020 = vunpack.c.l.b16 %v730
    %v1021 = vunpack.c.h.b16 %v730
    %v1022 = vunpack.c.l.b16 %v731
    %v1023 = vunpack.c.h.b16 %v731
    %v1024 = vunpack.c.l.b16 %v732
    %v1025 = vunpack.c.h.b16 %v732
    %v1026 = vunpack.c.l.b16 %v733
    %v1027 = vunpack.c.h.b16 %v733
    %v1028 = vunpack.c.l.b16 %v734
    %v1029 = vunpack.c.h.b16 %v734
    %v1030 = vunpack.c.l.b16 %v735
    %v1031 = vunpack.c.h.b16 %v735
    %v1032 = vunpack.c.l.b16 %v736
    %v1033 = vunpack.c.h.b16 %v736
    %v1034 = vunpack.c.l.b16 %v737
    %v1035 = vunpack.c.h.b16 %v737
    %v1036 = vunpack.c.l.b16 %v738
    %v1037 = vunpack.c.h.b16 %v738
    %v1038 = vunpack.c.l.b16 %v739
    %v1039 = vunpack.c.h.b16 %v739
    %v1040 = vunpack.c.l.b16 %v740
    %v1041 = vunpack.c.h.b16 %v740
    %v1042 = vunpack.c.l.b16 %v741
    %v1043 = vunpack.c.h.b16 %v741
    %v1044 = vunpack.c.l.b16 %v742
    %v1045 = vunpack.c.h.b16 %v742
    %v1046 = vunpack.c.l.b16 %v743
    %v1047 = vunpack.c.h.b16 %v743
    %v1048 = vunpack.c.l.b16 %v744
    %v1049 = vunpack.c.h.b16 %v744
    %v1050 = vunpack.c.l.b16 %v745
    %v1051 = vunpack.c.h.b16 %v745
    %v1052 = vunpack.c.l.b16 %v746
    %v1053 = vunpack.c.h.b16 %v746
    %v1054 = vunpack.c.l.b16 %v747
    %v1055 = vunpack.c.h.b16 %v747
    %v1056 = vunpack.c.l.b16 %v748
    %v1057 = vunpack.c.h.b16 %v748
    %v1058 = vunpack.c.l.b16 %v749
    %v1059 = vunpack.c.h.b16 %v749
    %v1060 = vunpack.c.l.b16 %v750
    %v1061 = vunpack.c.h.b16 %v750
    %v1062 = vunpack.c.l.b16 %v751
    %v1063 = vunpack.c.h.b16 %v751
    %v1064 = vunpack.c.l.b16 %v752
    %v1065 = vunpack.c.h.b16 %v752
    %v1066 = vunpack.c.l.b16 %v753
    %v1067 = vunpack.c.h.b16 %v753
    %v1068 = vunpack.c.l.b16 %v754
    %v1069 = vunpack.c.h.b16 %v754
    %v1070 = vunpack.c.l.b16 %v755
    %v1071 = vunpack.c.h.b16 %v755
    %v1072 = vunpack.c.l.b16 %v756
    %v1073 = vunpack.c.h.b16 %v756
    %v1074 = vunpack.c.l.b16 %v757
    %v1075 = vunpack.c.h.b16 %v757
    %v1076 = vunpack.c.l.b16 %v758
    %v1077 = vunpack.c.h.b16 %v758
    %v1078 = vunpack.c.l.b16 %v759
    %v1079 = vunpack.c.h.b16 %v759
    %v1080 = vpack.c.b16 %v1018, %v1016
    %v1081 = vpack.c.b16 %v1019, %v1017
    %v1082 = vpack.c.b16 %v1022, %v1020
    %v1083 = vpack.c.b16 %v1023, %v1021
    %v1084 = vpack.c.b16 %v1026, %v1024
    %v1085 = vpack.c.b16 %v1027, %v1025
    %v1086 = vpack.c.b16 %v1030, %v1028
    %v1087 = vpack.c.b16 %v1031, %v1029
    %v1088 = vpack.c.b16 %v1034, %v1032
    %v1089 = vpack.c.b16 %v1035, %v1033
    %v1090 = vpack.c.b16 %v1038, %v1036
    %v1091 = vpack.c.b16 %v1039, %v1037
    %v1092 = vpack.c.b16 %v1042, %v1040
    %v1093 = vpack.c.b16 %v1043, %v1041
    %v1094 = vpack.c.b16 %v1046, %v1044
    %v1095 = vpack.c.b16 %v1047, %v1045
    %v1096 = vpack.c.b16 %v1050, %v1048
    %v1097 = vpack.c.b16 %v1051, %v1049
    %v1098 = vpack.c.b16 %v1054, %v1052
    %v1099 = vpack.c.b16 %v1055, %v1053
    %v1100 = vpack.c.b16 %v1058, %v1056
    %v1101 = vpack.c.b16 %v1059, %v1057
    %v1102 = vpack.c.b16 %v1062, %v1060
    %v1103 = vpack.c.b16 %v1063, %v1061
    %v1104 = vpack.c.b16 %v1066, %v1064
    %v1105 = vpack.c.b16 %v1067, %v1065
    %v1106 = vpack.c.b16 %v1070, %v1068
    %v1107 = vpack.c.b16 %v1071, %v1069
    %v1108 = vpack.c.b16 %v1074, %v1072
    %v1109 = vpack.c.b16 %v1075, %v1073
    %v1110 = vpack.c.b16 %v1078, %v1076
    %v1111 = vpack.c.b16 %v1079, %v1077
    %1144 = vmatprep.subr.bf16.mxu0 %v775
    %1145 = vmatpush1.bf16.msra.mxu0 %v774
    %1146 = vmatprep.subr.bf16.mxu0 %v773
    %1147 = vmatpush1.bf16.msra.mxu0 %v772
    %1148 = vmatprep.subr.bf16.mxu0 %v771
    %1149 = vmatpush1.bf16.msra.mxu0 %v770
    %1150 = vmatprep.subr.bf16.mxu0 %v769
    %1151 = vmatpush1.bf16.msra.mxu0 %v768
    %1152 = vmatprep.subr.bf16.mxu0 %v767
    %1153 = vmatpush1.bf16.msra.mxu0 %v766
    %1154 = vmatprep.subr.bf16.mxu0 %v765
    %1155 = vmatpush1.bf16.msra.mxu0 %v764
    %1156 = vmatprep.subr.bf16.mxu0 %v763
    %1157 = vmatpush1.bf16.msra.mxu0 %v762
    %1158 = vmatprep.subr.bf16.mxu0 %v761
    %1159 = vmatpush1.bf16.msra.mxu0 %v760
    %1160 = vmatprep.subr.bf16.mxu0 %v791
    %1161 = vmatpush2.bf16.msra.mxu0 %v790
    %1162 = vmatprep.subr.bf16.mxu0 %v789
    %1163 = vmatpush2.bf16.msra.mxu0 %v788
    %1164 = vmatprep.subr.bf16.mxu0 %v787
    %1165 = vmatpush2.bf16.msra.mxu0 %v786
    %1166 = vmatprep.subr.bf16.mxu0 %v785
    %1167 = vmatpush2.bf16.msra.mxu0 %v784
    %1168 = vmatprep.subr.bf16.mxu0 %v783
    %1169 = vmatpush2.bf16.msra.mxu0 %v782
    %1170 = vmatprep.subr.bf16.mxu0 %v781
    %1171 = vmatpush2.bf16.msra.mxu0 %v780
    %1172 = vmatprep.subr.bf16.mxu0 %v779
    %1173 = vmatpush2.bf16.msra.mxu0 %v778
    %1174 = vmatprep.subr.bf16.mxu0 %v777
    %1175 = vmatpush2.bf16.msra.mxu0 %v776
    %1176 = vmatprep.mubr.bf16.mxu0 %v1081
    %1177 = vmatmul.mubr.bf16.gmra.mxu0 %v1080
    %v1178 = vpop.f32.mrf.mxu0
    %v1179 = vadd.f32 %v827, %v1178
    %v1180 = vpop.f32.mrf.mxu0
    %v1181 = vadd.f32 %v827, %v1180
    %v1182 = vpop.f32.mrf.mxu0
    %v1183 = vadd.f32 %v832, %v1182
    %v1184 = vpop.f32.mrf.mxu0
    %v1185 = vadd.f32 %v832, %v1184
    %1186 = vmatprep.mubr.bf16.mxu0 %v1083
    %1187 = vmatmul.mubr.bf16.gmra.mxu0 %v1082
    %v1188 = vpop.f32.mrf.mxu0
    %v1189 = vadd.f32 %v837, %v1188
    %v1190 = vpop.f32.mrf.mxu0
    %v1191 = vadd.f32 %v837, %v1190
    %v1192 = vpop.f32.mrf.mxu0
    %v1193 = vadd.f32 %v842, %v1192
    %v1194 = vpop.f32.mrf.mxu0
    %v1195 = vadd.f32 %v842, %v1194
    %1196 = vmatprep.mubr.bf16.mxu0 %v1085
    %1197 = vmatmul.mubr.bf16.gmra.mxu0 %v1084
    %v1198 = vpop.f32.mrf.mxu0
    %v1199 = vadd.f32 %v847, %v1198
    %v1200 = vpop.f32.mrf.mxu0
    %v1201 = vadd.f32 %v847, %v1200
    %v1202 = vpop.f32.mrf.mxu0
    %v1203 = vadd.f32 %v852, %v1202
    %v1204 = vpop.f32.mrf.mxu0
    %v1205 = vadd.f32 %v852, %v1204
    %1206 = vmatprep.mubr.bf16.mxu0 %v1087
    %1207 = vmatmul.mubr.bf16.gmra.mxu0 %v1086
    %v1208 = vpop.f32.mrf.mxu0
    %v1209 = vadd.f32 %v857, %v1208
    %v1210 = vpop.f32.mrf.mxu0
    %v1211 = vadd.f32 %v857, %v1210
    %v1212 = vpop.f32.mrf.mxu0
    %v1213 = vadd.f32 %v862, %v1212
    %v1214 = vpop.f32.mrf.mxu0
    %v1215 = vadd.f32 %v862, %v1214
    %1216 = vmatprep.mubr.bf16.mxu0 %v1089
    %1217 = vmatmul.mubr.bf16.gmra.mxu0 %v1088
    %v1218 = vpop.f32.mrf.mxu0
    %v1219 = vadd.f32 %v867, %v1218
    %v1220 = vpop.f32.mrf.mxu0
    %v1221 = vadd.f32 %v867, %v1220
    %v1222 = vpop.f32.mrf.mxu0
    %v1223 = vadd.f32 %v872, %v1222
    %v1224 = vpop.f32.mrf.mxu0
    %v1225 = vadd.f32 %v872, %v1224
    %1226 = vmatprep.mubr.bf16.mxu0 %v1091
    %1227 = vmatmul.mubr.bf16.gmra.mxu0 %v1090
    %v1228 = vpop.f32.mrf.mxu0
    %v1229 = vadd.f32 %v877, %v1228
    %v1230 = vpop.f32.mrf.mxu0
    %v1231 = vadd.f32 %v877, %v1230
    %v1232 = vpop.f32.mrf.mxu0
    %v1233 = vadd.f32 %v882, %v1232
    %v1234 = vpop.f32.mrf.mxu0
    %v1235 = vadd.f32 %v882, %v1234
    %1236 = vmatprep.mubr.bf16.mxu0 %v1093
    %1237 = vmatmul.mubr.bf16.gmra.mxu0 %v1092
    %v1238 = vpop.f32.mrf.mxu0
    %v1239 = vadd.f32 %v887, %v1238
    %v1240 = vpop.f32.mrf.mxu0
    %v1241 = vadd.f32 %v887, %v1240
    %v1242 = vpop.f32.mrf.mxu0
    %v1243 = vadd.f32 %v892, %v1242
    %v1244 = vpop.f32.mrf.mxu0
    %v1245 = vadd.f32 %v892, %v1244
    %1246 = vmatprep.mubr.bf16.mxu0 %v1095
    %1247 = vmatmul.mubr.bf16.gmra.mxu0 %v1094
    %v1248 = vpop.f32.mrf.mxu0
    %v1249 = vadd.f32 %v897, %v1248
    %v1250 = vpop.f32.mrf.mxu0
    %v1251 = vadd.f32 %v897, %v1250
    %v1252 = vpop.f32.mrf.mxu0
    %v1253 = vadd.f32 %v902, %v1252
    %v1254 = vpop.f32.mrf.mxu0
    %v1255 = vadd.f32 %v902, %v1254
    %1256 = vmatprep.mubr.bf16.mxu0 %v1097
    %1257 = vmatmul.mubr.bf16.gmra.mxu0 %v1096
    %v1258 = vpop.f32.mrf.mxu0
    %v1259 = vadd.f32 %v907, %v1258
    %v1260 = vpop.f32.mrf.mxu0
    %v1261 = vadd.f32 %v907, %v1260
    %v1262 = vpop.f32.mrf.mxu0
    %v1263 = vadd.f32 %v912, %v1262
    %v1264 = vpop.f32.mrf.mxu0
    %v1265 = vadd.f32 %v912, %v1264
    %1266 = vmatprep.mubr.bf16.mxu0 %v1099
    %1267 = vmatmul.mubr.bf16.gmra.mxu0 %v1098
    %v1268 = vpop.f32.mrf.mxu0
    %v1269 = vadd.f32 %v917, %v1268
    %v1270 = vpop.f32.mrf.mxu0
    %v1271 = vadd.f32 %v917, %v1270
    %v1272 = vpop.f32.mrf.mxu0
    %v1273 = vadd.f32 %v922, %v1272
    %v1274 = vpop.f32.mrf.mxu0
    %v1275 = vadd.f32 %v922, %v1274
    %1276 = vmatprep.mubr.bf16.mxu0 %v1101
    %1277 = vmatmul.mubr.bf16.gmra.mxu0 %v1100
    %v1278 = vpop.f32.mrf.mxu0
    %v1279 = vadd.f32 %v927, %v1278
    %v1280 = vpop.f32.mrf.mxu0
    %v1281 = vadd.f32 %v927, %v1280
    %v1282 = vpop.f32.mrf.mxu0
    %v1283 = vadd.f32 %v932, %v1282
    %v1284 = vpop.f32.mrf.mxu0
    %v1285 = vadd.f32 %v932, %v1284
    %1286 = vmatprep.mubr.bf16.mxu0 %v1103
    %1287 = vmatmul.mubr.bf16.gmra.mxu0 %v1102
    %v1288 = vpop.f32.mrf.mxu0
    %v1289 = vadd.f32 %v937, %v1288
    %v1290 = vpop.f32.mrf.mxu0
    %v1291 = vadd.f32 %v937, %v1290
    %v1292 = vpop.f32.mrf.mxu0
    %v1293 = vadd.f32 %v942, %v1292
    %v1294 = vpop.f32.mrf.mxu0
    %v1295 = vadd.f32 %v942, %v1294
    %1296 = vmatprep.mubr.bf16.mxu0 %v1105
    %1297 = vmatmul.mubr.bf16.gmra.mxu0 %v1104
    %v1298 = vpop.f32.mrf.mxu0
    %v1299 = vadd.f32 %v947, %v1298
    %v1300 = vpop.f32.mrf.mxu0
    %v1301 = vadd.f32 %v947, %v1300
    %v1302 = vpop.f32.mrf.mxu0
    %v1303 = vadd.f32 %v952, %v1302
    %v1304 = vpop.f32.mrf.mxu0
    %v1305 = vadd.f32 %v952, %v1304
    %1306 = vmatprep.mubr.bf16.mxu0 %v1107
    %1307 = vmatmul.mubr.bf16.gmra.mxu0 %v1106
    %v1308 = vpop.f32.mrf.mxu0
    %v1309 = vadd.f32 %v957, %v1308
    %v1310 = vpop.f32.mrf.mxu0
    %v1311 = vadd.f32 %v957, %v1310
    %v1312 = vpop.f32.mrf.mxu0
    %v1313 = vadd.f32 %v962, %v1312
    %v1314 = vpop.f32.mrf.mxu0
    %v1315 = vadd.f32 %v962, %v1314
    %1316 = vmatprep.mubr.bf16.mxu0 %v1109
    %1317 = vmatmul.mubr.bf16.gmra.mxu0 %v1108
    %v1318 = vpop.f32.mrf.mxu0
    %v1319 = vadd.f32 %v967, %v1318
    %v1320 = vpop.f32.mrf.mxu0
    %v1321 = vadd.f32 %v967, %v1320
    %v1322 = vpop.f32.mrf.mxu0
    %v1323 = vadd.f32 %v972, %v1322
    %v1324 = vpop.f32.mrf.mxu0
    %v1325 = vadd.f32 %v972, %v1324
    %1326 = vmatprep.mubr.bf16.mxu0 %v1111
    %1327 = vmatmul.mubr.bf16.gmra.mxu0 %v1110
    %v1328 = vpop.f32.mrf.mxu0
    %v1329 = vadd.f32 %v977, %v1328
    %v1330 = vpop.f32.mrf.mxu0
    %v1331 = vadd.f32 %v977, %v1330
    %v1332 = vpop.f32.mrf.mxu0
    %v1333 = vadd.f32 %v982, %v1332
    %v1334 = vpop.f32.mrf.mxu0
    %v1335 = vadd.f32 %v982, %v1334
    %1336 = vdwg.mxu0
    %v1337 = vmul.f32 %v1179, 0.2
    %v1338 = vmul.f32 %v1181, 0.2
    %v1339 = vmul.f32 %v1183, 0.2
    %v1340 = vmul.f32 %v1185, 0.2
    %v1341 = vmul.f32 %v1189, 0.2
    %v1342 = vmul.f32 %v1191, 0.2
    %v1343 = vmul.f32 %v1193, 0.2
    %v1344 = vmul.f32 %v1195, 0.2
    %v1345 = vmul.f32 %v1199, 0.2
    %v1346 = vmul.f32 %v1201, 0.2
    %v1347 = vmul.f32 %v1203, 0.2
    %v1348 = vmul.f32 %v1205, 0.2
    %v1349 = vmul.f32 %v1209, 0.2
    %v1350 = vmul.f32 %v1211, 0.2
    %v1351 = vmul.f32 %v1213, 0.2
    %v1352 = vmul.f32 %v1215, 0.2
    %v1353 = vmul.f32 %v1219, 0.2
    %v1354 = vmul.f32 %v1221, 0.2
    %v1355 = vmul.f32 %v1223, 0.2
    %v1356 = vmul.f32 %v1225, 0.2
    %v1357 = vmul.f32 %v1229, 0.2
    %v1358 = vmul.f32 %v1231, 0.2
    %v1359 = vmul.f32 %v1233, 0.2
    %v1360 = vmul.f32 %v1235, 0.2
    %v1361 = vmul.f32 %v1239, 0.2
    %v1362 = vmul.f32 %v1241, 0.2
    %v1363 = vmul.f32 %v1243, 0.2
    %v1364 = vmul.f32 %v1245, 0.2
    %v1365 = vmul.f32 %v1249, 0.2
    %v1366 = vmul.f32 %v1251, 0.2
    %v1367 = vmul.f32 %v1253, 0.2
    %v1368 = vmul.f32 %v1255, 0.2
    %v1369 = vmul.f32 %v1259, 0.2
    %v1370 = vmul.f32 %v1261, 0.2
    %v1371 = vmul.f32 %v1263, 0.2
    %v1372 = vmul.f32 %v1265, 0.2
    %v1373 = vmul.f32 %v1269, 0.2
    %v1374 = vmul.f32 %v1271, 0.2
    %v1375 = vmul.f32 %v1273, 0.2
    %v1376 = vmul.f32 %v1275, 0.2
    %v1377 = vmul.f32 %v1279, 0.2
    %v1378 = vmul.f32 %v1281, 0.2
    %v1379 = vmul.f32 %v1283, 0.2
    %v1380 = vmul.f32 %v1285, 0.2
    %v1381 = vmul.f32 %v1289, 0.2
    %v1382 = vmul.f32 %v1291, 0.2
    %v1383 = vmul.f32 %v1293, 0.2
    %v1384 = vmul.f32 %v1295, 0.2
    %v1385 = vmul.f32 %v1299, 0.2
    %v1386 = vmul.f32 %v1301, 0.2
    %v1387 = vmul.f32 %v1303, 0.2
    %v1388 = vmul.f32 %v1305, 0.2
    %v1389 = vmul.f32 %v1309, 0.2
    %v1390 = vmul.f32 %v1311, 0.2
    %v1391 = vmul.f32 %v1313, 0.2
    %v1392 = vmul.f32 %v1315, 0.2
    %v1393 = vmul.f32 %v1319, 0.2
    %v1394 = vmul.f32 %v1321, 0.2
    %v1395 = vmul.f32 %v1323, 0.2
    %v1396 = vmul.f32 %v1325, 0.2
    %v1397 = vmul.f32 %v1329, 0.2
    %v1398 = vmul.f32 %v1331, 0.2
    %v1399 = vmul.f32 %v1333, 0.2
    %v1400 = vmul.f32 %v1335, 0.2
    %v1401 = vmax.f32 %v1179, %v1337
    %v1402 = vmax.f32 %v1181, %v1338
    %v1403 = vmax.f32 %v1183, %v1339
    %v1404 = vmax.f32 %v1185, %v1340
    %v1405 = vmax.f32 %v1189, %v1341
    %v1406 = vmax.f32 %v1191, %v1342
    %v1407 = vmax.f32 %v1193, %v1343
    %v1408 = vmax.f32 %v1195, %v1344
    %v1409 = vmax.f32 %v1199, %v1345
    %v1410 = vmax.f32 %v1201, %v1346
    %v1411 = vmax.f32 %v1203, %v1347
    %v1412 = vmax.f32 %v1205, %v1348
    %v1413 = vmax.f32 %v1209, %v1349
    %v1414 = vmax.f32 %v1211, %v1350
    %v1415 = vmax.f32 %v1213, %v1351
    %v1416 = vmax.f32 %v1215, %v1352
    %v1417 = vmax.f32 %v1219, %v1353
    %v1418 = vmax.f32 %v1221, %v1354
    %v1419 = vmax.f32 %v1223, %v1355
    %v1420 = vmax.f32 %v1225, %v1356
    %v1421 = vmax.f32 %v1229, %v1357
    %v1422 = vmax.f32 %v1231, %v1358
    %v1423 = vmax.f32 %v1233, %v1359
    %v1424 = vmax.f32 %v1235, %v1360
    %v1425 = vmax.f32 %v1239, %v1361
    %v1426 = vmax.f32 %v1241, %v1362
    %v1427 = vmax.f32 %v1243, %v1363
    %v1428 = vmax.f32 %v1245, %v1364
    %v1429 = vmax.f32 %v1249, %v1365
    %v1430 = vmax.f32 %v1251, %v1366
    %v1431 = vmax.f32 %v1253, %v1367
    %v1432 = vmax.f32 %v1255, %v1368
    %v1433 = vmax.f32 %v1259, %v1369
    %v1434 = vmax.f32 %v1261, %v1370
    %v1435 = vmax.f32 %v1263, %v1371
    %v1436 = vmax.f32 %v1265, %v1372
    %v1437 = vmax.f32 %v1269, %v1373
    %v1438 = vmax.f32 %v1271, %v1374
    %v1439 = vmax.f32 %v1273, %v1375
    %v1440 = vmax.f32 %v1275, %v1376
    %v1441 = vmax.f32 %v1279, %v1377
    %v1442 = vmax.f32 %v1281, %v1378
    %v1443 = vmax.f32 %v1283, %v1379
    %v1444 = vmax.f32 %v1285, %v1380
    %v1445 = vmax.f32 %v1289, %v1381
    %v1446 = vmax.f32 %v1291, %v1382
    %v1447 = vmax.f32 %v1293, %v1383
    %v1448 = vmax.f32 %v1295, %v1384
    %v1449 = vmax.f32 %v1299, %v1385
    %v1450 = vmax.f32 %v1301, %v1386
    %v1451 = vmax.f32 %v1303, %v1387
    %v1452 = vmax.f32 %v1305, %v1388
    %v1453 = vmax.f32 %v1309, %v1389
    %v1454 = vmax.f32 %v1311, %v1390
    %v1455 = vmax.f32 %v1313, %v1391
    %v1456 = vmax.f32 %v1315, %v1392
    %v1457 = vmax.f32 %v1319, %v1393
    %v1458 = vmax.f32 %v1321, %v1394
    %v1459 = vmax.f32 %v1323, %v1395
    %v1460 = vmax.f32 %v1325, %v1396
    %v1461 = vmax.f32 %v1329, %v1397
    %v1462 = vmax.f32 %v1331, %v1398
    %v1463 = vmax.f32 %v1333, %v1399
    %v1464 = vmax.f32 %v1335, %v1400
    %v1465 = vld [vmem:[%s5] sm:$0x3]
    %v1466 = vpack.c.bf16 %v1403, %v1401
    %v1467 = vpack.c.bf16 %v1404, %v1402
    %v1468 = vpack.c.bf16 %v1407, %v1405
    %v1469 = vpack.c.bf16 %v1408, %v1406
    %v1470 = vpack.c.bf16 %v1411, %v1409
    %v1471 = vpack.c.bf16 %v1412, %v1410
    %v1472 = vpack.c.bf16 %v1415, %v1413
    %v1473 = vpack.c.bf16 %v1416, %v1414
    %v1474 = vpack.c.bf16 %v1419, %v1417
    %v1475 = vpack.c.bf16 %v1420, %v1418
    %v1476 = vpack.c.bf16 %v1423, %v1421
    %v1477 = vpack.c.bf16 %v1424, %v1422
    %v1478 = vpack.c.bf16 %v1427, %v1425
    %v1479 = vpack.c.bf16 %v1428, %v1426
    %v1480 = vpack.c.bf16 %v1431, %v1429
    %v1481 = vpack.c.bf16 %v1432, %v1430
    %v1482 = vpack.c.bf16 %v1435, %v1433
    %v1483 = vpack.c.bf16 %v1436, %v1434
    %v1484 = vpack.c.bf16 %v1439, %v1437
    %v1485 = vpack.c.bf16 %v1440, %v1438
    %v1486 = vpack.c.bf16 %v1443, %v1441
    %v1487 = vpack.c.bf16 %v1444, %v1442
    %v1488 = vpack.c.bf16 %v1447, %v1445
    %v1489 = vpack.c.bf16 %v1448, %v1446
    %v1490 = vpack.c.bf16 %v1451, %v1449
    %v1491 = vpack.c.bf16 %v1452, %v1450
    %v1492 = vpack.c.bf16 %v1455, %v1453
    %v1493 = vpack.c.bf16 %v1456, %v1454
    %v1494 = vpack.c.bf16 %v1459, %v1457
    %v1495 = vpack.c.bf16 %v1460, %v1458
    %v1496 = vpack.c.bf16 %v1463, %v1461
    %v1497 = vpack.c.bf16 %v1464, %v1462
    %v1498 = vld [vmem:[#allocation2] sm:$0x1]
    %1500 = vset.pattern.permute.xlu0 0
    %1501 = vperm.xlu0 %1500, %v1498
    %v1502 = vpop.permute.xlu0 %1501
    %v1504 = vlaneseq
    %v1505 = vshrl.u32 %v1504, 7
    %v1506 = vsub.s32 0, %v1505
    %v1507 = vrot.slane %v1502, %v1506
    %v1510 = vunpack.c.l.s4 1966171168
    %v1511 = vunpack.c.0.s8 %v1510
    %v1512 = vlaneseq
    %v1513 = vshrl.u32 %v1512, 7
    %v1514 = vsub.s32 %v1511, %v1513
    %v1515 = vrot.slane %v1465, %v1514
    %v1516 = vcombine.high %v1515, %v1515
    %v1518 = vunpack.c.l.s4 1966171168
    %v1519 = vunpack.c.0.s8 %v1518
    %v1520 = vlaneseq
    %v1521 = vshrl.u32 %v1520, 7
    %v1522 = vsub.s32 %v1519, %v1521
    %v1523 = vrot.slane %v1515, %v1522
    %v1525 = vunpack.c.l.s4 1966171168
    %v1526 = vunpack.c.0.s8 %v1525
    %v1527 = vlaneseq
    %v1528 = vshrl.u32 %v1527, 7
    %v1529 = vsub.s32 %v1526, %v1528
    %v1530 = vrot.slane %v1516, %v1529
    %1533 = vmatprep.subr.bf16.mxu0 %v1481
    %1534 = vmatpush1.bf16.msra.mxu0 %v1480
    %1535 = vmatprep.subr.bf16.mxu0 %v1479
    %1536 = vmatpush1.bf16.msra.mxu0 %v1478
    %1537 = vmatprep.subr.bf16.mxu0 %v1477
    %1538 = vmatpush1.bf16.msra.mxu0 %v1476
    %1539 = vmatprep.subr.bf16.mxu0 %v1475
    %1540 = vmatpush1.bf16.msra.mxu0 %v1474
    %1541 = vmatprep.subr.bf16.mxu0 %v1473
    %1542 = vmatpush1.bf16.msra.mxu0 %v1472
    %1543 = vmatprep.subr.bf16.mxu0 %v1471
    %1544 = vmatpush1.bf16.msra.mxu0 %v1470
    %1545 = vmatprep.subr.bf16.mxu0 %v1469
    %1546 = vmatpush1.bf16.msra.mxu0 %v1468
    %1547 = vmatprep.subr.bf16.mxu0 %v1467
    %1548 = vmatpush1.bf16.msra.mxu0 %v1466
    %1549 = vmatprep.subr.bf16.mxu0 %v1497
    %1550 = vmatpush2.bf16.msra.mxu0 %v1496
    %1551 = vmatprep.subr.bf16.mxu0 %v1495
    %1552 = vmatpush2.bf16.msra.mxu0 %v1494
    %1553 = vmatprep.subr.bf16.mxu0 %v1493
    %1554 = vmatpush2.bf16.msra.mxu0 %v1492
    %1555 = vmatprep.subr.bf16.mxu0 %v1491
    %1556 = vmatpush2.bf16.msra.mxu0 %v1490
    %1557 = vmatprep.subr.bf16.mxu0 %v1489
    %1558 = vmatpush2.bf16.msra.mxu0 %v1488
    %1559 = vmatprep.subr.bf16.mxu0 %v1487
    %1560 = vmatpush2.bf16.msra.mxu0 %v1486
    %1561 = vmatprep.subr.bf16.mxu0 %v1485
    %1562 = vmatpush2.bf16.msra.mxu0 %v1484
    %1563 = vmatprep.subr.bf16.mxu0 %v1483
    %1564 = vmatpush2.bf16.msra.mxu0 %v1482
    %1565 = vmatprep.mubr.bf16.mxu0 %v1530
    %1566 = vmatmul.mubr.bf16.gmra.mxu0 %v1523
    %v1567 = vpop.f32.mrf.mxu0
    %v1568 = vadd.f32 %v1507, %v1567
    %v1569 = vpop.f32.mrf.mxu0
    %v1570 = vadd.f32 %v1507, %v1569
    %v1571 = vpop.f32.mrf.mxu0
    %v1572 = vpop.f32.mrf.mxu0
    %1573 = vdwg.mxu0
    %v1574 = vxor.u32 %v1568, 2147483648
    %v1575 = vxor.u32 %v1570, 2147483648
    %v1576 = vmul.f32 %v1574, 1.442695
    %v1577 = vpow.pop %v1576
    %v1578 = vmul.f32 %v1575, 1.442695
    %v1579 = vpow.pop %v1578
    %v1580 = vadd.f32 %v1577, 1.0
    %v1581 = vadd.f32 %v1579, 1.0
    %v1582 = vrcp.pop %v1580
    %v1583 = vmul.f32 1.0, %v1582
    %v1584 = vrcp.pop %v1581
    %v1585 = vmul.f32 1.0, %v1584
    %v1588 = vcombine.low %v1583, %v1585
    %v1590 = vunpack.c.l.s4 1966171168
    %v1591 = vunpack.c.0.s8 %v1590
    %v1592 = vlaneseq
    %v1593 = vshrl.u32 %v1592, 7
    %v1594 = vsub.s32 %v1591, %v1593
    %v1595 = vrot.slane %v1588, %v1594
    %v1597 = vunpack.c.l.s4 1966171168
    %v1598 = vunpack.c.0.s8 %v1597
    %v1599 = vlaneseq
    %v1600 = vshrl.u32 %v1599, 7
    %v1601 = vsub.s32 %v1598, %v1600
    %v1602 = vrot.slane %v1595, %v1601
    %v1604 = vlaneseq
    %vm1605 = vcmp.ge.s32.totalorder %v1604, 0
    %vm1606 = vcmp.lt.s32.totalorder %v1604, 256
    %vm1607 = vmand %vm1605, %vm1606
    %1608 = vst.msk [vmem:[#allocation3] sm:$0x3] %vm1607, %v1602
    // Predicated region
    $region30: #{_lambda_.1} parent=1 // pred_check
      _
    $region31: #{_lambda_.1} parent=1 // pred_check_branch
      %1610 = sbr.rel (0) target = $region33
    $region32: #{_lambda_.1} parent=1 // pred_region
      %s1612 = ssub.s32 32, 32
      %1613 = vsyncadd [#allocation4], %s1612
      %s1615 = sshll.u32 [#allocation3], 4
      %s1616 = int_to_ptr.vmem [resolvable:$true] %s1615
      %1618 = dma.vmem_to_hbm [thread:$0]  %s1616, 32, %s7, [#allocation4]
    $region33: #{_lambda_.1} parent=1 // pred_fallthru
      _
    // Predicated region
    $region34: #{_lambda_.1} parent=1 // pred_check
      _
    $region35: #{_lambda_.1} parent=1 // pred_check_branch
      %1620 = sbr.rel (0) target = $region37
    $region36: #{_lambda_.1} parent=1 // pred_region
      %1621 = dma.done [#allocation4], 32
    $region37: #{_lambda_.1} parent=1 // pred_fallthru
      _
    %1622 = vsyncpa [#allocation4], 1

</llo_original>
